<compile_context>
chip_gen: v5e
topology: v5e:2x2
jax: 0.10.0
libtpu: 0.0.40
codegen_flags: <defaults>
</compile_context>

<pallas_src>
import functools
import math

import jax
import jax.numpy as jnp
from jax.experimental import pallas as pl
from jax.experimental.pallas import tpu as pltpu


def _gru_gate_kernel(wu_ref, xh_ref, b_ref, o_ref, *, activation):
    # Single fused MXU matmul: [W | U] @ [x ; hidden], f32 accumulation.
    pre = jnp.dot(wu_ref[...], xh_ref[...], preferred_element_type=jnp.float32)
    pre = pre + b_ref[...].astype(jnp.float32)
    # Elementwise epilogue (bias add + activation) stays in f32 on the VPU/EUP.
    o_ref[...] = activation(pre).astype(o_ref.dtype)


def _round_up(n, m):
    return ((n + m - 1) // m) * m


def _pad_to(a, shape):
    pads = [(0, s - d) for d, s in zip(a.shape, shape)]
    if any(p for _, p in pads):
        return jnp.pad(a, pads)
    return a


def _pick_tile(padded_dim, cap):
    """Pick a tile size (<= cap) and the padded extent it evenly divides."""
    if padded_dim <= cap:
        return padded_dim, padded_dim
    return cap, _round_up(padded_dim, cap)


def mat_gru_gate(W, U, bias, x, hidden, activation=jax.nn.sigmoid,
                 compute_dtype=None):
    """Fused Pallas implementation of mat_GRU_gate.forward.

    out = activation(W @ x + U @ hidden + bias)
    """
    rows, cols = bias.shape
    assert W.shape == (rows, rows) and U.shape == (rows, rows)
    assert x.shape == (rows, cols) and hidden.shape == (rows, cols)

    out_dtype = x.dtype

    # ---- Fuse the two matmuls: [W | U] @ [x ; hidden] --------------------
    WU = jnp.concatenate([W, U], axis=1)        # (rows, 2*rows)
    xh = jnp.concatenate([x, hidden], axis=0)   # (2*rows, cols)
    if compute_dtype is not None:
        # bf16 operands on v6e/v7x; accumulation stays f32 in the kernel.
        WU = WU.astype(compute_dtype)
        xh = xh.astype(compute_dtype)

    # ---- Lane-dense / MXU-friendly padding -------------------------------
    K = 2 * rows
    m_pad = _round_up(rows, 8)     # sublane alignment for the M (row) dim
    k_pad = _round_up(K, 128)      # lane dim of WU / sublane dim of xh
    n_pad = _round_up(cols, 128)   # lane-dense output (>= 128 wide stores)

    # Tile sizes: whole problem in one block while it fits, otherwise 256/512
    # class tiles (multiples of the 256-wide v6e/v7x MXU; well inside v7x's
    # 64 MiB VMEM even with double-buffering).
    tm, m_pad = _pick_tile(m_pad, 256)
    tn, n_pad = _pick_tile(n_pad, 512)

    WU_p = _pad_to(WU, (m_pad, k_pad))
    xh_p = _pad_to(xh, (k_pad, n_pad))
    b_p = _pad_to(bias, (m_pad, n_pad))

    grid = (m_pad // tm, n_pad // tn)

    out_p = pl.pallas_call(
        functools.partial(_gru_gate_kernel, activation=activation),
        out_shape=jax.ShapeDtypeStruct((m_pad, n_pad), out_dtype),
        grid=grid,
        in_specs=[
            pl.BlockSpec((tm, k_pad), lambda i, j: (i, 0)),   # WU row-tile
            pl.BlockSpec((k_pad, tn), lambda i, j: (0, j)),   # xh col-tile
            pl.BlockSpec((tm, tn), lambda i, j: (i, j)),      # bias tile
        ],
        out_specs=pl.BlockSpec((tm, tn), lambda i, j: (i, j)),
        compiler_params=pltpu.CompilerParams(
            dimension_semantics=("parallel", "parallel"),
        ),
    )(WU_p, xh_p, b_p)

    # Drop zero-padding (activation(0) values in the pad region never escape).
    return out_p[:rows, :cols]


def _reference(W, U, bias, x, hidden, activation=jax.nn.sigmoid):
    return activation(W @ x + U @ hidden + bias)


if __name__ == "__main__":
    rows, cols = 32, 32  # small, consistent with mat_GRU_gate(rows, cols, ...)
    key = jax.random.PRNGKey(0)
    kW, kU, kx, kh = jax.random.split(key, 4)

    # reset_param: uniform(-stdv, stdv), stdv = 1/sqrt(rows)
    stdv = 1.0 / math.sqrt(rows)
    W = jax.random.uniform(kW, (rows, rows), jnp.float32, -stdv, stdv)
    U = jax.random.uniform(kU, (rows, rows), jnp.float32, -stdv, stdv)
    bias = jnp.zeros((rows, cols), jnp.float32)

    x = jax.random.normal(kx, (rows, cols), jnp.float32)
    hidden = jax.random.normal(kh, (rows, cols), jnp.float32)

    # Sigmoid gate (update/reset); tanh (h_tilde) works via activation=jnp.tanh.
    out = mat_gru_gate(W, U, bias, x, hidden, activation=jax.nn.sigmoid)
    out = jax.block_until_ready(out)

    ref = _reference(W, U, bias, x, hidden)
    assert out.shape == (rows, cols)
    assert jnp.allclose(out, ref, atol=1e-5, rtol=1e-5), "mismatch vs reference"

    # Also check the tanh path (same kernel, different epilogue activation).
    out_t = jax.block_until_ready(
        mat_gru_gate(W, U, bias, x, hidden, activation=jnp.tanh))
    ref_t = _reference(W, U, bias, x, hidden, activation=jnp.tanh)
    assert jnp.allclose(out_t, ref_t, atol=1e-5, rtol=1e-5), "tanh mismatch"

    print("KERNEL_OK")
</pallas_src>

<mosaic_0001>
module attributes {stable_mosaic.version = 11 : i64} {
  func.func @_gru_gate_kernel(%arg0: i32, %arg1: i32, %arg2: memref<32x128xf32, #tpu.memory_space<vmem>>, %arg3: memref<128x128xf32, #tpu.memory_space<vmem>>, %arg4: memref<32x128xf32, #tpu.memory_space<vmem>>, %arg5: memref<32x128xf32, #tpu.memory_space<vmem>>) attributes {dimension_semantics = [#tpu.dimension_semantics<parallel>, #tpu.dimension_semantics<parallel>], iteration_bounds = array<i64: 1, 1>, scalar_prefetch = 0 : i64, scratch_operands = 0 : i64, tpu.core_type = #tpu.core_type<tc>, window_params = [{transform_indices = @transform_0, window_bounds = array<i64: 32, 128>}, {transform_indices = @transform_1, window_bounds = array<i64: 128, 128>}, {transform_indices = @transform_2, window_bounds = array<i64: 32, 128>}, {transform_indices = @transform_3, window_bounds = array<i64: 32, 128>}]} {
    %c0 = arith.constant 0 : index
    %c0_0 = arith.constant 0 : index
    %0 = vector.load %arg2[%c0, %c0_0] : memref<32x128xf32, #tpu.memory_space<vmem>>, vector<32x128xf32>
    %c0_1 = arith.constant 0 : index
    %c0_2 = arith.constant 0 : index
    %1 = vector.load %arg3[%c0_1, %c0_2] : memref<128x128xf32, #tpu.memory_space<vmem>>, vector<128x128xf32>
    %cst = arith.constant dense<0.000000e+00> : vector<32x128xf32>
    %2 = tpu.matmul %0, %1, %cst {dimension_numbers = #tpu.dot_dimension_numbers<[1], [0], [0], [1], [0, 0, 1, 1], [], []>} : vector<32x128xf32>, vector<128x128xf32>, vector<32x128xf32> -> vector<32x128xf32>
    %c0_3 = arith.constant 0 : index
    %c0_4 = arith.constant 0 : index
    %3 = vector.load %arg4[%c0_3, %c0_4] : memref<32x128xf32, #tpu.memory_space<vmem>>, vector<32x128xf32>
    %4 = arith.addf %2, %3 : vector<32x128xf32>
    %5 = arith.negf %4 : vector<32x128xf32>
    %6 = math.exp %5 : vector<32x128xf32>
    %cst_5 = arith.constant 1.000000e+00 : f32
    %7 = vector.broadcast %cst_5 : f32 to vector<32x128xf32>
    %8 = arith.addf %7, %6 : vector<32x128xf32>
    %9 = arith.divf %7, %8 : vector<32x128xf32>
    %c0_6 = arith.constant 0 : index
    %c0_7 = arith.constant 0 : index
    %10 = vector.load %arg5[%c0_6, %c0_7] : memref<32x128xf32, #tpu.memory_space<vmem>>, vector<32x128xf32>
    tpu.vector_store %arg5[%c0_6, %c0_7], %9 {strides = array<i32>} : memref<32x128xf32, #tpu.memory_space<vmem>>, vector<32x128xf32>,
    return
  }
  func.func @transform_0(%arg0: i32, %arg1: i32) -> (i32, i32) {
    %c0_i32 = arith.constant 0 : i32
    %c0_i32_0 = arith.constant 0 : i32
    return %arg0, %c0_i32 : i32, i32
  }
  func.func @transform_1(%arg0: i32, %arg1: i32) -> (i32, i32) {
    %c0_i32 = arith.constant 0 : i32
    %c0_i32_0 = arith.constant 0 : i32
    return %c0_i32, %arg1 : i32, i32
  }
  func.func @transform_2(%arg0: i32, %arg1: i32) -> (i32, i32) {
    %c0_i32 = arith.constant 0 : i32
    return %arg0, %arg1 : i32, i32
  }
  func.func @transform_3(%arg0: i32, %arg1: i32) -> (i32, i32) {
    %c0_i32 = arith.constant 0 : i32
    return %arg0, %arg1 : i32, i32
  }
}

</mosaic_0001>

<llo_original>
// kernel: tpu_custom_call.1
$region0: #{tpu_custom_call.1}
  #allocation0 [shape = 'u32[]', space=smem, size = 0x4, offset = 0x4, fixed_abs, tag = 'smem constant byte address 0x4 - core index']
  #allocation1 [shape = 'u32[72,128]{1,0:T(1,128)}', space=vmem, size = 0x9000, scoped, tag = 'internal scratch']
  %s0 = inlined_call_operand.hbm [shape: f32[32,128], index: 0, kind: input, shape index: {}]
  %s1 = inlined_call_operand.hbm [shape: f32[128,128], index: 1, kind: input, shape index: {}]
  %s2 = inlined_call_operand.hbm [shape: f32[32,128], index: 2, kind: input, shape index: {}]
  %s3 = inlined_call_operand.hbm [shape: f32[32,128], index: 3, kind: output, shape index: {}]
  %s4 = sld [smem:[#allocation0]]
  $region34: #{tpu_custom_call.1} parent=0
    _
  %s6 = ssub.s32 1, %s4
  %s7 = scalar_select 0, %s6, %s4
  $region1: #{tpu_custom_call.1} parent=0
    #allocation2 [shape = 'u8[16384]{0}', space=vmem, size = 0x4000, scoped, tag = 'input window, operand 0, single buffered']
    #allocation3 [shape = 's32[1]{0}', space=sflag, size = 0x4, scoped, tag = 'scoped memory for tpu_custom_call.1']
    #allocation4 [shape = 's32[1]{0}', space=sflag, size = 0x4, scoped, tag = 'scoped memory for tpu_custom_call.1']
    #allocation5 [shape = 'u8[65536]{0}', space=vmem, size = 0x10000, scoped, tag = 'input window, operand 1, single buffered']
    #allocation6 [shape = 's32[1]{0}', space=sflag, size = 0x4, scoped, tag = 'scoped memory for tpu_custom_call.1']
    #allocation7 [shape = 'u8[16384]{0}', space=vmem, size = 0x4000, scoped, tag = 'input window, operand 2, single buffered']
    #allocation8 [shape = 'u8[16384]{0}', space=vmem, size = 0x4000, scoped, tag = 'output window, operand 0, single buffered']
    %8 = vsyncpa [#allocation3], 0
    %9 = vsyncpa [#allocation6], 0
    %10 = vsyncpa [#allocation4], 0
    // Predicated region
    $region2: #{tpu_custom_call.1} parent=1 // pred_check
      _
    $region3: #{tpu_custom_call.1} parent=1 // pred_check_branch
      %12 = sbr.rel (0) target = $region5
    $region4: #{tpu_custom_call.1} parent=1 // pred_region
      %14 = vsyncadd [#allocation3], 0
      %s15 = sshll.u32 %s0, 4
      %s16 = int_to_ptr.hbm [resolvable:$true] %s15
      %s17 = sshll.u32 [#allocation2], 4
      %s18 = int_to_ptr.vmem [resolvable:$true] %s17
      %23 = dma.hbm_to_vmem [thread:$0]  %s16, 512, %s18, [#allocation3], 128, 128, 8
    $region5: #{tpu_custom_call.1} parent=1 // pred_fallthru
      _
    // Predicated region
    $region6: #{tpu_custom_call.1} parent=1 // pred_check
      _
    $region7: #{tpu_custom_call.1} parent=1 // pred_check_branch
      %25 = sbr.rel (0) target = $region9
    $region8: #{tpu_custom_call.1} parent=1 // pred_region
      %27 = vsyncadd [#allocation6], 0
      %s28 = sshll.u32 %s1, 4
      %s29 = int_to_ptr.hbm [resolvable:$true] %s28
      %s30 = sshll.u32 [#allocation5], 4
      %s31 = int_to_ptr.vmem [resolvable:$true] %s30
      %36 = dma.hbm_to_vmem [thread:$0]  %s29, 2048, %s31, [#allocation6], 128, 128, 8
    $region9: #{tpu_custom_call.1} parent=1 // pred_fallthru
      _
    // Predicated region
    $region10: #{tpu_custom_call.1} parent=1 // pred_check
      _
    $region11: #{tpu_custom_call.1} parent=1 // pred_check_branch
      %38 = sbr.rel (0) target = $region13
    $region12: #{tpu_custom_call.1} parent=1 // pred_region
      %40 = vsyncadd [#allocation6], 0
      %s41 = sshll.u32 %s2, 4
      %s42 = int_to_ptr.hbm [resolvable:$true] %s41
      %s43 = sshll.u32 [#allocation7], 4
      %s44 = int_to_ptr.vmem [resolvable:$true] %s43
      %49 = dma.hbm_to_vmem [thread:$0]  %s42, 512, %s44, [#allocation6], 128, 128, 8
    $region13: #{tpu_custom_call.1} parent=1 // pred_fallthru
      _
    // Predicated region
    $region14: #{tpu_custom_call.1} parent=1 // pred_check
      _
    $region15: #{tpu_custom_call.1} parent=1 // pred_check_branch
      %51 = sbr.rel (0) target = $region17
    $region16: #{tpu_custom_call.1} parent=1 // pred_region
      %53 = dma.done [#allocation3], 512
    $region17: #{tpu_custom_call.1} parent=1 // pred_fallthru
      _
    // Predicated region
    $region18: #{tpu_custom_call.1} parent=1 // pred_check
      _
    $region19: #{tpu_custom_call.1} parent=1 // pred_check_branch
      %55 = sbr.rel (0) target = $region21
    $region20: #{tpu_custom_call.1} parent=1 // pred_region
      %57 = dma.done [#allocation6], 2048
    $region21: #{tpu_custom_call.1} parent=1 // pred_fallthru
      _
    // Predicated region
    $region22: #{tpu_custom_call.1} parent=1 // pred_check
      _
    $region23: #{tpu_custom_call.1} parent=1 // pred_check_branch
      %59 = sbr.rel (0) target = $region25
    $region24: #{tpu_custom_call.1} parent=1 // pred_region
      %61 = dma.done [#allocation6], 512
    $region25: #{tpu_custom_call.1} parent=1 // pred_fallthru
      _
    %v62 = vld [vmem:[#allocation2] sm:$0xff]
    %v63 = vld [vmem:[#allocation2 + $0x8] sm:$0xff]
    %v64 = vld [vmem:[#allocation2 + $0x10] sm:$0xff]
    %v65 = vld [vmem:[#allocation2 + $0x18] sm:$0xff]
    %v66 = vld [vmem:[#allocation5] sm:$0xff]
    %v67 = vld [vmem:[#allocation5 + $0x8] sm:$0xff]
    %v68 = vld [vmem:[#allocation5 + $0x10] sm:$0xff]
    %v69 = vld [vmem:[#allocation5 + $0x18] sm:$0xff]
    %v70 = vld [vmem:[#allocation5 + $0x20] sm:$0xff]
    %v71 = vld [vmem:[#allocation5 + $0x28] sm:$0xff]
    %v72 = vld [vmem:[#allocation5 + $0x30] sm:$0xff]
    %v73 = vld [vmem:[#allocation5 + $0x38] sm:$0xff]
    %v74 = vld [vmem:[#allocation5 + $0x40] sm:$0xff]
    %v75 = vld [vmem:[#allocation5 + $0x48] sm:$0xff]
    %v76 = vld [vmem:[#allocation5 + $0x50] sm:$0xff]
    %v77 = vld [vmem:[#allocation5 + $0x58] sm:$0xff]
    %v78 = vld [vmem:[#allocation5 + $0x60] sm:$0xff]
    %v79 = vld [vmem:[#allocation5 + $0x68] sm:$0xff]
    %v80 = vld [vmem:[#allocation5 + $0x70] sm:$0xff]
    %v81 = vld [vmem:[#allocation5 + $0x78] sm:$0xff]
    %v82 = vld [vmem:[#allocation7] sm:$0xff]
    %v83 = vld [vmem:[#allocation7 + $0x8] sm:$0xff]
    %v84 = vld [vmem:[#allocation7 + $0x10] sm:$0xff]
    %v85 = vld [vmem:[#allocation7 + $0x18] sm:$0xff]
    %86 = vmatpush.msra.mxu0 %v81
    %87 = vmatpush.msra.mxu0 %v80
    %88 = vmatpush.msra.mxu0 %v79
    %89 = vmatpush.msra.mxu0 %v78
    %90 = vmatpush.msra.mxu0 %v77
    %91 = vmatpush.msra.mxu0 %v76
    %92 = vmatpush.msra.mxu0 %v75
    %93 = vmatpush.msra.mxu0 %v74
    %94 = vmatpush.msra.mxu0 %v73
    %95 = vmatpush.msra.mxu0 %v72
    %96 = vmatpush.msra.mxu0 %v71
    %97 = vmatpush.msra.mxu0 %v70
    %98 = vmatpush.msra.mxu0 %v69
    %99 = vmatpush.msra.mxu0 %v68
    %100 = vmatpush.msra.mxu0 %v67
    %101 = vmatpush.msra.mxu0 %v66
    %102 = vmatmul.f32.gmra.mxu0 %v62
    %v103 = vpop.f32.mrf.mxu0
    %v104 = vadd.f32 %v82, %v103
    %105 = vmatmul.f32.gmra.mxu0 %v63
    %v106 = vpop.f32.mrf.mxu0
    %v107 = vadd.f32 %v83, %v106
    %108 = vmatmul.f32.gmra.mxu0 %v64
    %v109 = vpop.f32.mrf.mxu0
    %v110 = vadd.f32 %v84, %v109
    %111 = vmatmul.f32.gmra.mxu0 %v65
    %v112 = vpop.f32.mrf.mxu0
    %v113 = vadd.f32 %v85, %v112
    %114 = vdwg.mxu0
    %v115 = vxor.u32 %v104, 2147483648
    %v116 = vxor.u32 %v107, 2147483648
    %v117 = vxor.u32 %v110, 2147483648
    %v118 = vxor.u32 %v113, 2147483648
    %v119 = vmul.f32 %v115, 1.442695
    %v120 = vpow.pop %v119
    %v121 = vmul.f32 %v116, 1.442695
    %v122 = vpow.pop %v121
    %v123 = vmul.f32 %v117, 1.442695
    %v124 = vpow.pop %v123
    %v125 = vmul.f32 %v118, 1.442695
    %v126 = vpow.pop %v125
    %v127 = vadd.f32 %v120, 1.0
    %v128 = vadd.f32 %v122, 1.0
    %v129 = vadd.f32 %v124, 1.0
    %v130 = vadd.f32 %v126, 1.0
    %v131 = vrcp.pop %v127
    %v132 = vmul.f32 %v127, %v131
    %v133 = vsub.f32 1.0, %v132
    %v134 = vmul.f32 %v131, %v133
    %v135 = vadd.f32 %v131, %v134
    %vm136 = vweird.f32 %v127
    %vm137 = vweird.f32 %v131
    %vm138 = vmor %vm136, %vm137
    %v139 = vsel %vm138, %v131, %v135
    %v140 = vand.u32 2147483647, %v127
    %vm141 = vcmp.eq.f32.partialorder %v140, 8.507059e+37
    %v142 = vand.u32 %v127, 2147483648
    %v143 = vor.u32 1.1754944e-38, %v142
    %v144 = vsel %vm141, %v143, %v139
    %v145 = vmul.f32 1.0, %v144
    %v146 = vrcp.pop %v128
    %v147 = vmul.f32 %v128, %v146
    %v148 = vsub.f32 1.0, %v147
    %v149 = vmul.f32 %v146, %v148
    %v150 = vadd.f32 %v146, %v149
    %vm151 = vweird.f32 %v128
    %vm152 = vweird.f32 %v146
    %vm153 = vmor %vm151, %vm152
    %v154 = vsel %vm153, %v146, %v150
    %v155 = vand.u32 2147483647, %v128
    %vm156 = vcmp.eq.f32.partialorder %v155, 8.507059e+37
    %v157 = vand.u32 %v128, 2147483648
    %v158 = vor.u32 1.1754944e-38, %v157
    %v159 = vsel %vm156, %v158, %v154
    %v160 = vmul.f32 1.0, %v159
    %v161 = vrcp.pop %v129
    %v162 = vmul.f32 %v129, %v161
    %v163 = vsub.f32 1.0, %v162
    %v164 = vmul.f32 %v161, %v163
    %v165 = vadd.f32 %v161, %v164
    %vm166 = vweird.f32 %v129
    %vm167 = vweird.f32 %v161
    %vm168 = vmor %vm166, %vm167
    %v169 = vsel %vm168, %v161, %v165
    %v170 = vand.u32 2147483647, %v129
    %vm171 = vcmp.eq.f32.partialorder %v170, 8.507059e+37
    %v172 = vand.u32 %v129, 2147483648
    %v173 = vor.u32 1.1754944e-38, %v172
    %v174 = vsel %vm171, %v173, %v169
    %v175 = vmul.f32 1.0, %v174
    %v176 = vrcp.pop %v130
    %v177 = vmul.f32 %v130, %v176
    %v178 = vsub.f32 1.0, %v177
    %v179 = vmul.f32 %v176, %v178
    %v180 = vadd.f32 %v176, %v179
    %vm181 = vweird.f32 %v130
    %vm182 = vweird.f32 %v176
    %vm183 = vmor %vm181, %vm182
    %v184 = vsel %vm183, %v176, %v180
    %v185 = vand.u32 2147483647, %v130
    %vm186 = vcmp.eq.f32.partialorder %v185, 8.507059e+37
    %v187 = vand.u32 %v130, 2147483648
    %v188 = vor.u32 1.1754944e-38, %v187
    %v189 = vsel %vm186, %v188, %v184
    %v190 = vmul.f32 1.0, %v189
    %191 = vst [vmem:[#allocation8] sm:$0xff] %v145
    %192 = vst [vmem:[#allocation8 + $0x8] sm:$0xff] %v160
    %193 = vst [vmem:[#allocation8 + $0x10] sm:$0xff] %v175
    %194 = vst [vmem:[#allocation8 + $0x18] sm:$0xff] %v190
    // Predicated region
    $region26: #{tpu_custom_call.1} parent=1 // pred_check
      _
    $region27: #{tpu_custom_call.1} parent=1 // pred_check_branch
      %196 = sbr.rel (0) target = $region29
    $region28: #{tpu_custom_call.1} parent=1 // pred_region
      %198 = vsyncadd [#allocation4], 0
      %s199 = sshll.u32 [#allocation8], 4
      %s200 = int_to_ptr.vmem [resolvable:$true] %s199
      %s201 = sshll.u32 %s3, 4
      %s202 = int_to_ptr.hbm [resolvable:$true] %s201
      %207 = dma.vmem_to_hbm [thread:$0]  %s200, 512, %s202, [#allocation4], 128, 128, 8
    $region29: #{tpu_custom_call.1} parent=1 // pred_fallthru
      _
    // Predicated region
    $region30: #{tpu_custom_call.1} parent=1 // pred_check
      _
    $region31: #{tpu_custom_call.1} parent=1 // pred_check_branch
      %209 = sbr.rel (0) target = $region33
    $region32: #{tpu_custom_call.1} parent=1 // pred_region
      %211 = dma.done [#allocation4], 512
    $region33: #{tpu_custom_call.1} parent=1 // pred_fallthru
      _
    %212 = vsyncpa [#allocation3], 1
    %213 = vsyncpa [#allocation6], 1
    %214 = vsyncpa [#allocation4], 1

</llo_original>
